<compile_context>
chip_gen: v7x
topology: tpu7x:2x2x1
jax: 0.10.0
libtpu: 0.0.40
codegen_flags: <defaults>
</compile_context>

<pallas_src>
import warnings

import jax
import jax.numpy as jnp
from jax.experimental import pallas as pl
from jax.experimental.pallas import tpu as pltpu

# Donation may occasionally be unusable depending on surrounding layout; the
# kernel is still correct, so silence the advisory warning.
warnings.filterwarnings("ignore", message="Some donated buffers were not usable")

_LANES = 128                    # vreg lane width
_TARGET_BLOCK_BYTES = 1 << 20   # ~1 MiB blocks: safe on v7x (64 MiB VMEM),
                                # negligible per-step overhead on all gens


def _copy_kernel(x_ref, o_ref):
    # Pure pass-through: the reference forward performs no computation.
    o_ref[...] = x_ref[...]


def _identity_single_block(x):
    """Copy `x` with one full-extent block (exempt from the (8,128) rule)."""
    ndim = x.ndim
    nbytes = x.size * x.dtype.itemsize
    compiler_params = None
    # Un-tiled in+out footprint is ~2x the array; give headroom above the
    # default scoped VMEM (16 MiB on v5e) for mid-size ragged tensors.
    if 2 * nbytes > (12 << 20):
        compiler_params = pltpu.CompilerParams(
            vmem_limit_bytes=min(2 * nbytes + (4 << 20), 64 << 20))
    return pl.pallas_call(
        _copy_kernel,
        out_shape=jax.ShapeDtypeStruct(x.shape, x.dtype),
        in_specs=[pl.BlockSpec(x.shape, lambda *_: (0,) * ndim)],
        out_specs=pl.BlockSpec(x.shape, lambda *_: (0,) * ndim),
        input_output_aliases={0: 0},   # identity is pure bandwidth: alias in->out
        compiler_params=compiler_params,
    )(x)


def _identity_tiled(x2d, tile_rows):
    """Copy a lane-dense (rows, lanes) slab with a 1-D row grid."""
    rows, lanes = x2d.shape
    return pl.pallas_call(
        _copy_kernel,
        out_shape=jax.ShapeDtypeStruct(x2d.shape, x2d.dtype),
        grid=(pl.cdiv(rows, tile_rows),),
        in_specs=[pl.BlockSpec((tile_rows, lanes), lambda i: (i, 0))],
        out_specs=pl.BlockSpec((tile_rows, lanes), lambda i: (i, 0)),
        input_output_aliases={0: 0},
        compiler_params=pltpu.CompilerParams(
            # Independent tiles: shard across v7x's 2 TCs (no-op on v5e/v6e).
            dimension_semantics=("parallel",),
        ),
    )(x2d)


def _pallas_identity(x):
    """Identity copy of x via a lane-dense Pallas kernel (no pad/slice passes)."""
    orig_shape = x.shape
    total = x.size
    if total == 0:
        return x

    if total % _LANES != 0:
        # Ragged size: copy in the original shape with one full-extent block.
        # TODO(synk): for very large ragged tensors, split the tail in-kernel
        # with a masked store on the last block instead of a single block.
        return _identity_single_block(x)

    # Lane-dense slab; widen the lane dim beyond 128 when the size allows so
    # stores stay fully unmasked with fewer sublane rows.
    lanes = _LANES
    for cand in (1024, 512, 256):
        if total % cand == 0:
            lanes = cand
            break
    rows = total // lanes
    x2d = x.reshape(rows, lanes)

    bytes_per_row = lanes * x2d.dtype.itemsize
    tile_rows = max(8, min(rows, _TARGET_BLOCK_BYTES // bytes_per_row))
    tile_rows -= tile_rows % 8  # sublane-aligned block rows

    if tile_rows <= 0 or tile_rows >= rows:
        # Small / mid tensor: one block, no grid, no per-step overhead.
        y2d = _identity_single_block(x2d)
    else:
        y2d = _identity_tiled(x2d, tile_rows)

    return y2d.reshape(orig_shape)


# Donate the input so input_output_aliases={0:0} is a real alias (saves one
# full HBM pass on a pure-bandwidth copy).  Safe: the result has the same
# contents, and callers that still need the original should copy first.
_pallas_identity_jit = jax.jit(_pallas_identity, donate_argnums=0)


def dqn_forward(x):
    """Faithful to the reference: DQN.forward(x) returns None.

    The reference forward performs zero compute and returns nothing, so no
    kernel is launched here (it would be pure waste / dead code under jit).
    """
    # TODO(synk): reference forward body is empty (`return`); no real compute to port.
    del x
    return None


if __name__ == "__main__":
    key = jax.random.PRNGKey(0)
    # Small NCHW input consistent with a typical DQN-style image input.
    x = jax.random.normal(key, (2, 4, 16, 16), dtype=jnp.float32)
    # x's buffer is donated to the kernel below; keep an independent copy for
    # verification and for the (no-op) forward call.
    x_expected = x.copy()

    # Run the lane-dense identity kernel once and block on its output.
    y = _pallas_identity_jit(x)
    jax.block_until_ready(y)

    # Sanity check: identity kernel must reproduce the input exactly.
    assert y.shape == x_expected.shape and y.dtype == x_expected.dtype
    assert jnp.array_equal(y, x_expected), "Pallas identity kernel mismatch"

    # Match reference semantics: forward returns None.
    out = dqn_forward(x_expected)
    assert out is None

    print("KERNEL_OK")
</pallas_src>

<mosaic_0001>
module attributes {stable_mosaic.version = 11 : i64} {
  func.func @_copy_kernel(%arg0: memref<2x1024xf32, #tpu.memory_space<vmem>>, %arg1: memref<2x1024xf32, #tpu.memory_space<vmem>>) attributes {dimension_semantics = [], scalar_prefetch = 0 : i64, scratch_operands = 0 : i64, tpu.core_type = #tpu.core_type<tc>} {
    %c0 = arith.constant 0 : index
    %c0_0 = arith.constant 0 : index
    %0 = vector.load %arg0[%c0, %c0_0] : memref<2x1024xf32, #tpu.memory_space<vmem>>, vector<2x1024xf32>
    %c0_1 = arith.constant 0 : index
    %c0_2 = arith.constant 0 : index
    %1 = vector.load %arg1[%c0_1, %c0_2] : memref<2x1024xf32, #tpu.memory_space<vmem>>, vector<2x1024xf32>
    tpu.vector_store %arg1[%c0_1, %c0_2], %0 {strides = array<i32>} : memref<2x1024xf32, #tpu.memory_space<vmem>>, vector<2x1024xf32>,
    return
  }
}

</mosaic_0001>

<llo_original>
// kernel: _pallas_identity.1
$region0: #{_pallas_identity.1}
  #allocation0 [shape = 'u32[]', space=smem, size = 0x4, offset = 0x4, fixed_abs, tag = 'smem constant byte address 0x4 - core index']
  #allocation1 [shape = 'u32[144,128]{1,0:T(1,128)}', space=vmem, size = 0x12000, scoped, tag = 'internal scratch']
  %s0 = inlined_call_operand.vmem [shape: f32[2,1024], index: 0, kind: input, shape index: {}, may-alias: {0,1}]
  %s1 = inlined_call_operand.vmem [shape: f32[2,1024], index: 1, kind: output, shape index: {}, may-alias: {0,1}]
  %s2 = sld [smem:[#allocation0]]
  $region14: #{_pallas_identity.1} parent=0
    _
  %s4 = ssub.s32 1, %s2
  %s5 = scalar_select 0, %s4, %s2
  // Predicated region
  $region2: #{_pallas_identity.1} parent=0 // pred_check
    _
  $region3: #{_pallas_identity.1} parent=0 // pred_check_branch
    %7 = sbr.rel (0) target = $region5
  $region4: #{_pallas_identity.1} parent=0 // pred_region
    _
  $region5: #{_pallas_identity.1} parent=0 // pred_fallthru
    _
  %v8 = vld [vmem:[%s0] sm:$0xff]
  %v9 = vld [vmem:[%s0 + $0x8] sm:$0xff]
  %10 = vst [vmem:[%s1] sm:$0xff] %v8
  %11 = vst [vmem:[%s1 + $0x8] sm:$0xff] %v9
  // Predicated region
  $region6: #{_pallas_identity.1} parent=0 // pred_check
    _
  $region7: #{_pallas_identity.1} parent=0 // pred_check_branch
    %13 = sbr.rel (0) target = $region9
  $region8: #{_pallas_identity.1} parent=0 // pred_region
    _
  $region9: #{_pallas_identity.1} parent=0 // pred_fallthru
    _
  // Predicated region
  $region10: #{_pallas_identity.1} parent=0 // pred_check
    _
  $region11: #{_pallas_identity.1} parent=0 // pred_check_branch
    %15 = sbr.rel (0) target = $region13
  $region12: #{_pallas_identity.1} parent=0 // pred_region
    _
  $region13: #{_pallas_identity.1} parent=0 // pred_fallthru
    _

</llo_original>
